<compile_context>
chip_gen: v7x
topology: tpu7x:2x2x1
jax: 0.10.0
libtpu: 0.0.40
codegen_flags: <defaults>
</compile_context>

<pallas_src>
import numpy as np
import jax
import jax.numpy as jnp
from jax import lax
from jax.experimental import pallas as pl
from jax.experimental.pallas import tpu as pltpu


# ---------------------------------------------------------------------------
# Rotary helpers (keep the original "(i - 1)" quirk in the theta exponent).
# ---------------------------------------------------------------------------
def get_rotary_matrix(context_window, embedding_dim):
    """Dense (m, d, d) rotary matrix — used only by the pure-JAX reference."""
    r = np.zeros((context_window, embedding_dim, embedding_dim), dtype=np.float32)
    for position in range(context_window):
        for i in range(embedding_dim // 2):
            theta = 10000.0 ** (-2.0 * (i - 1) / embedding_dim)
            m_theta = position * theta
            r[position, 2 * i, 2 * i] = np.cos(m_theta)
            r[position, 2 * i, 2 * i + 1] = -np.sin(m_theta)
            r[position, 2 * i + 1, 2 * i] = np.sin(m_theta)
            r[position, 2 * i + 1, 2 * i + 1] = np.cos(m_theta)
    return jnp.asarray(r)


def get_rope_tables(context_window, embedding_dim):
    """cos/sin tables (m, d), each value duplicated over its (2i, 2i+1) pair.

    For a row vector q, the original q @ R[p] equals
        q * cos_tab[p] + (q @ P) * sin_tab[p]
    with P the block-diagonal pair-swap matrix below (sign folded into P).
    """
    pos = np.arange(context_window, dtype=np.float64)[:, None]        # (m, 1)
    i = np.arange(embedding_dim // 2, dtype=np.float64)[None, :]      # (1, d/2)
    theta = 10000.0 ** (-2.0 * (i - 1.0) / embedding_dim)             # (i-1) quirk
    ang = pos * theta                                                 # (m, d/2)
    cos = np.repeat(np.cos(ang), 2, axis=1).astype(np.float32)        # (m, d)
    sin = np.repeat(np.sin(ang), 2, axis=1).astype(np.float32)        # (m, d)
    return jnp.asarray(cos), jnp.asarray(sin)


def pair_swap_matrix(d):
    """(d, d) matrix of [[0, -1], [1, 0]] blocks:
       (q @ P)[2i] = q[2i+1],  (q @ P)[2i+1] = -q[2i]."""
    p = np.zeros((d, d), dtype=np.float32)
    idx = np.arange(d // 2)
    p[2 * idx + 1, 2 * idx] = 1.0
    p[2 * idx, 2 * idx + 1] = -1.0
    return jnp.asarray(p)


# ---------------------------------------------------------------------------
# Pallas kernel: one grid step per batch element.
#   x_ref   : (1, m, D)  bf16 activations (zero-padded to D lanes)
#   w_ref   : (D, 5D)    bf16 fused [s*Wq^T | Wk^T | Wv^T | s*Wq^T@P | Wk^T@P]
#   cos_ref : (m, D)     f32 per-position cos table (shared across batch)
#   sin_ref : (m, D)     f32 per-position sin table
#   o_ref   : (1, m, D)  f32 output
# ---------------------------------------------------------------------------
def rope_attn_kernel(x_ref, w_ref, cos_ref, sin_ref, o_ref):
    m = cos_ref.shape[0]
    D = w_ref.shape[0]

    x = x_ref[0]                                      # (m, D) bf16

    # One fused, 128-lane-aligned MXU pass (bf16 in, f32 accumulate) producing
    # q, k, v plus the pair-swapped q/k needed by element-wise RoPE.  The
    # 1/sqrt(d) attention scale is pre-folded into the q-side weight columns.
    proj = jnp.dot(x, w_ref[...], preferred_element_type=jnp.float32)  # (m, 5D)
    q = proj[:, 0 * D:1 * D]
    k = proj[:, 1 * D:2 * D]
    v = proj[:, 2 * D:3 * D]
    qs = proj[:, 3 * D:4 * D]      # (scaled) q @ P  — swap + sign folded into W
    ks = proj[:, 4 * D:5 * D]      # k @ P

    # Element-wise RoPE in f32 (O(m*D) VPU work, no (m, d, d) operand).
    cos = cos_ref[...]
    sin = sin_ref[...]
    q_rot = q * cos + qs * sin
    k_rot = k * cos + ks * sin

    # Scores: contract last dims directly (no k_rot.T relayout), bf16 MXU
    # operands, f32 accumulation.  Scale already folded into q_rot.
    scores = lax.dot_general(
        q_rot.astype(jnp.bfloat16), k_rot.astype(jnp.bfloat16),
        (((1,), (1,)), ((), ())),
        preferred_element_type=jnp.float32)           # (m, m)

    # Per-batch causal mask: a single iota compare (no // or % math).
    rows = lax.broadcasted_iota(jnp.int32, (m, m), 0)
    cols = lax.broadcasted_iota(jnp.int32, (m, m), 1)
    scores = jnp.where(rows >= cols, scores, -jnp.inf)

    # Numerically-stable softmax with deferred normalization: exp + PV matmul
    # first, then one (m, 1)-broadcast reciprocal multiply on the (m, D) output.
    scores = scores - jnp.max(scores, axis=-1, keepdims=True)
    p = jnp.exp(scores)                               # unnormalized probs, f32
    o_un = jnp.dot(p.astype(jnp.bfloat16), v.astype(jnp.bfloat16),
                   preferred_element_type=jnp.float32)          # (m, D)
    inv_l = pl.reciprocal(jnp.sum(p, axis=-1, keepdims=True), approx=True)
    o_ref[0] = o_un * inv_l


# ---------------------------------------------------------------------------
# Wrapper
# ---------------------------------------------------------------------------
def rope_attention_head(x, wq_t, wk_t, wv_t):
    """x: (b, m, d); wq_t/wk_t/wv_t: (d, d) pre-transposed nn.Linear weights."""
    b, m, d = x.shape
    D = ((max(d, 128) + 127) // 128) * 128            # lane-aligned width
    pad = D - d
    scale = 1.0 / np.sqrt(np.float32(d))

    # Fused weight: [s*Wq^T | Wk^T | Wv^T | s*Wq^T@P | Wk^T@P], each block
    # zero-padded to (D, D) so in-kernel slices are 128-lane-aligned views.
    P = pair_swap_matrix(d)
    blocks = [wq_t * scale, wk_t, wv_t, (wq_t @ P) * scale, wk_t @ P]
    blocks = [jnp.pad(blk, ((0, pad), (0, pad))) for blk in blocks]
    w_fused = jnp.concatenate(blocks, axis=1).astype(jnp.bfloat16)   # (D, 5D)

    cos, sin = get_rope_tables(m, d)                                 # (m, d)
    cos = jnp.pad(cos, ((0, 0), (0, pad)))                           # (m, D)
    sin = jnp.pad(sin, ((0, 0), (0, pad)))

    x_pad = jnp.pad(x, ((0, 0), (0, 0), (0, pad))).astype(jnp.bfloat16)  # (b,m,D)

    out = pl.pallas_call(
        rope_attn_kernel,
        out_shape=jax.ShapeDtypeStruct((b, m, D), jnp.float32),
        grid=(b,),
        in_specs=[
            pl.BlockSpec((1, m, D), lambda i: (i, 0, 0)),    # per-batch x tile
            pl.BlockSpec((D, 5 * D), lambda i: (0, 0)),      # fused weight
            pl.BlockSpec((m, D), lambda i: (0, 0)),          # cos (shared)
            pl.BlockSpec((m, D), lambda i: (0, 0)),          # sin (shared)
        ],
        out_specs=pl.BlockSpec((1, m, D), lambda i: (i, 0, 0)),
        compiler_params=pltpu.CompilerParams(
            dimension_semantics=("parallel",)),              # 2 TCs on v7x
    )(x_pad, w_fused, cos, sin)

    return out[:, :, :d]


# ---------------------------------------------------------------------------
# Pure-JAX reference (exact dense rotary matrix of the PyTorch code, all f32).
# ---------------------------------------------------------------------------
def reference(x, wq_t, wk_t, wv_t):
    b, m, d = x.shape
    R = get_rotary_matrix(m, d)
    q = x @ wq_t
    k = x @ wk_t
    v = x @ wv_t
    q_rot = jnp.einsum('bmd,mde->bme', q, R)
    k_rot = jnp.einsum('bmd,mde->bme', k, R)
    scores = jnp.einsum('bqd,bkd->bqk', q_rot, k_rot) / jnp.sqrt(jnp.float32(d))
    mask = np.tril(np.ones((m, m), dtype=bool))
    scores = jnp.where(mask, scores, -jnp.inf)
    p = jax.nn.softmax(scores, axis=-1)
    return jnp.einsum('bqk,bkd->bqd', p, v)


if __name__ == "__main__":
    # config: {'d_model': 32, 'context_window': 8}
    batch, context_window, d_model = 2, 8, 32

    key = jax.random.PRNGKey(0)
    kx, kq, kk, kv = jax.random.split(key, 4)

    x = jax.random.normal(kx, (batch, context_window, d_model), dtype=jnp.float32)

    # nn.Linear-style init: U(-1/sqrt(d_in), 1/sqrt(d_in)); stored pre-transposed.
    bound = 1.0 / np.sqrt(d_model)
    wq_t = jax.random.uniform(kq, (d_model, d_model), jnp.float32, -bound, bound)
    wk_t = jax.random.uniform(kk, (d_model, d_model), jnp.float32, -bound, bound)
    wv_t = jax.random.uniform(kv, (d_model, d_model), jnp.float32, -bound, bound)

    out = rope_attention_head(x, wq_t, wk_t, wv_t)
    out = jax.block_until_ready(out)

    ref = reference(x, wq_t, wk_t, wv_t)
    # Tolerance accounts for bf16 MXU operands (f32 accumulate) in all three
    # matmuls plus pl.reciprocal(approx=True) in the softmax normalization.
    np.testing.assert_allclose(np.asarray(out), np.asarray(ref), rtol=3e-2, atol=3e-2)

    print("KERNEL_OK")
</pallas_src>

<mosaic_0001>
module attributes {stable_mosaic.version = 11 : i64} {
  func.func @rope_attn_kernel(%arg0: i32, %arg1: memref<1x8x128xbf16, #tpu.memory_space<vmem>>, %arg2: memref<128x640xbf16, #tpu.memory_space<vmem>>, %arg3: memref<8x128xf32, #tpu.memory_space<vmem>>, %arg4: memref<8x128xf32, #tpu.memory_space<vmem>>, %arg5: memref<1x8x128xf32, #tpu.memory_space<vmem>>) attributes {dimension_semantics = [#tpu.dimension_semantics<parallel>], iteration_bounds = array<i64: 2>, scalar_prefetch = 0 : i64, scratch_operands = 0 : i64, tpu.core_type = #tpu.core_type<tc>, window_params = [{transform_indices = @transform_0, window_bounds = array<i64: 1, 8, 128>}, {pipeline_mode = #tpu.pipeline_mode<synchronous>, transform_indices = @transform_1, window_bounds = array<i64: 128, 640>}, {pipeline_mode = #tpu.pipeline_mode<synchronous>, transform_indices = @transform_2, window_bounds = array<i64: 8, 128>}, {pipeline_mode = #tpu.pipeline_mode<synchronous>, transform_indices = @transform_3, window_bounds = array<i64: 8, 128>}, {transform_indices = @transform_4, window_bounds = array<i64: 1, 8, 128>}]} {
    %c0 = arith.constant 0 : index
    %c0_0 = arith.constant 0 : index
    %c0_1 = arith.constant 0 : index
    %0 = vector.load %arg1[%c0, %c0_0, %c0_1] : memref<1x8x128xbf16, #tpu.memory_space<vmem>>, vector<1x8x128xbf16>
    %1 = vector.shape_cast %0 : vector<1x8x128xbf16> to vector<8x128xbf16>
    %c0_2 = arith.constant 0 : index
    %c0_3 = arith.constant 0 : index
    %2 = vector.load %arg2[%c0_2, %c0_3] : memref<128x640xbf16, #tpu.memory_space<vmem>>, vector<128x640xbf16>
    %cst = arith.constant dense<0.000000e+00> : vector<8x640xf32>
    %3 = tpu.matmul %1, %2, %cst {dimension_numbers = #tpu.dot_dimension_numbers<[1], [0], [0], [1], [0, 0, 1, 1], [], []>} : vector<8x128xbf16>, vector<128x640xbf16>, vector<8x640xf32> -> vector<8x640xf32>
    %4 = vector.extract_strided_slice %3 {offsets = [0, 0], sizes = [8, 128], strides = [1, 1]} : vector<8x640xf32> to vector<8x128xf32>
    %5 = vector.extract_strided_slice %3 {offsets = [0, 128], sizes = [8, 128], strides = [1, 1]} : vector<8x640xf32> to vector<8x128xf32>
    %6 = vector.extract_strided_slice %3 {offsets = [0, 256], sizes = [8, 128], strides = [1, 1]} : vector<8x640xf32> to vector<8x128xf32>
    %7 = vector.extract_strided_slice %3 {offsets = [0, 384], sizes = [8, 128], strides = [1, 1]} : vector<8x640xf32> to vector<8x128xf32>
    %8 = vector.extract_strided_slice %3 {offsets = [0, 512], sizes = [8, 128], strides = [1, 1]} : vector<8x640xf32> to vector<8x128xf32>
    %c0_4 = arith.constant 0 : index
    %c0_5 = arith.constant 0 : index
    %9 = vector.load %arg3[%c0_4, %c0_5] : memref<8x128xf32, #tpu.memory_space<vmem>>, vector<8x128xf32>
    %c0_6 = arith.constant 0 : index
    %c0_7 = arith.constant 0 : index
    %10 = vector.load %arg4[%c0_6, %c0_7] : memref<8x128xf32, #tpu.memory_space<vmem>>, vector<8x128xf32>
    %11 = arith.mulf %4, %9 : vector<8x128xf32>
    %12 = arith.mulf %7, %10 : vector<8x128xf32>
    %13 = arith.addf %11, %12 : vector<8x128xf32>
    %14 = arith.mulf %5, %9 : vector<8x128xf32>
    %15 = arith.mulf %8, %10 : vector<8x128xf32>
    %16 = arith.addf %14, %15 : vector<8x128xf32>
    %17 = arith.truncf %13 : vector<8x128xf32> to vector<8x128xbf16>
    %18 = arith.truncf %16 : vector<8x128xf32> to vector<8x128xbf16>
    %cst_8 = arith.constant dense<0.000000e+00> : vector<8x8xf32>
    %19 = tpu.matmul %17, %18, %cst_8 {dimension_numbers = #tpu.dot_dimension_numbers<[1], [1], [0], [0], [0, 0, 1, 0], [], []>} : vector<8x128xbf16>, vector<8x128xbf16>, vector<8x8xf32> -> vector<8x8xf32>
    %20 = tpu.iota {dimensions = array<i32: 0>} : vector<8x8xi32>
    %21 = tpu.iota {dimensions = array<i32: 1>} : vector<8x8xi32>
    %22 = arith.cmpi sge, %20, %21 : vector<8x8xi32>
    %cst_9 = arith.constant 0xFF800000 : f32
    %23 = vector.broadcast %cst_9 : f32 to vector<8x8xf32>
    %24 = arith.select %22, %19, %23 : vector<8x8xi1>, vector<8x8xf32>
    %cst_10 = arith.constant dense<0xFF800000> : vector<8xf32>
    %25 = vector.multi_reduction <maximumf>, %24, %cst_10 [1] : vector<8x8xf32> to vector<8xf32>
    %26 = vector.shape_cast %25 : vector<8xf32> to vector<8x1xf32>
    %27 = vector.broadcast %26 : vector<8x1xf32> to vector<8x8xf32>
    %28 = arith.subf %24, %27 : vector<8x8xf32>
    %29 = math.exp %28 : vector<8x8xf32>
    %30 = arith.truncf %29 : vector<8x8xf32> to vector<8x8xbf16>
    %31 = arith.truncf %6 : vector<8x128xf32> to vector<8x128xbf16>
    %cst_11 = arith.constant dense<0.000000e+00> : vector<8x128xf32>
    %32 = tpu.matmul %30, %31, %cst_11 {dimension_numbers = #tpu.dot_dimension_numbers<[1], [0], [0], [1], [0, 0, 1, 1], [], []>} : vector<8x8xbf16>, vector<8x128xbf16>, vector<8x128xf32> -> vector<8x128xf32>
    %cst_12 = arith.constant dense<0.000000e+00> : vector<8xf32>
    %33 = vector.multi_reduction <add>, %29, %cst_12 [1] : vector<8x8xf32> to vector<8xf32>
    %34 = vector.shape_cast %33 : vector<8xf32> to vector<8x1xf32>
    %35 = tpu.reciprocal %34 {approx = true} : vector<8x1xf32> -> vector<8x1xf32>
    %36 = vector.broadcast %35 : vector<8x1xf32> to vector<8x128xf32>
    %37 = arith.mulf %32, %36 : vector<8x128xf32>
    %c0_13 = arith.constant 0 : index
    %c0_14 = arith.constant 0 : index
    %c0_15 = arith.constant 0 : index
    %38 = vector.load %arg5[%c0_13, %c0_14, %c0_15] : memref<1x8x128xf32, #tpu.memory_space<vmem>>, vector<1x8x128xf32>
    %39 = vector.shape_cast %38 : vector<1x8x128xf32> to vector<8x128xf32>
    %40 = vector.shape_cast %37 : vector<8x128xf32> to vector<1x8x128xf32>
    tpu.vector_store %arg5[%c0_13, %c0_14, %c0_15], %40 {strides = array<i32>} : memref<1x8x128xf32, #tpu.memory_space<vmem>>, vector<1x8x128xf32>,
    return
  }
  func.func @transform_0(%arg0: i32) -> (i32, i32, i32) {
    %c0_i32 = arith.constant 0 : i32
    %c0_i32_0 = arith.constant 0 : i32
    %c0_i32_1 = arith.constant 0 : i32
    return %arg0, %c0_i32, %c0_i32_0 : i32, i32, i32
  }
  func.func @transform_1(%arg0: i32) -> (i32, i32) {
    %c0_i32 = arith.constant 0 : i32
    %c0_i32_0 = arith.constant 0 : i32
    %c0_i32_1 = arith.constant 0 : i32
    return %c0_i32, %c0_i32_0 : i32, i32
  }
  func.func @transform_2(%arg0: i32) -> (i32, i32) {
    %c0_i32 = arith.constant 0 : i32
    %c0_i32_0 = arith.constant 0 : i32
    %c0_i32_1 = arith.constant 0 : i32
    return %c0_i32, %c0_i32_0 : i32, i32
  }
  func.func @transform_3(%arg0: i32) -> (i32, i32) {
    %c0_i32 = arith.constant 0 : i32
    %c0_i32_0 = arith.constant 0 : i32
    %c0_i32_1 = arith.constant 0 : i32
    return %c0_i32, %c0_i32_0 : i32, i32
  }
  func.func @transform_4(%arg0: i32) -> (i32, i32, i32) {
    %c0_i32 = arith.constant 0 : i32
    %c0_i32_0 = arith.constant 0 : i32
    %c0_i32_1 = arith.constant 0 : i32
    return %arg0, %c0_i32, %c0_i32_0 : i32, i32, i32
  }
}

</mosaic_0001>

<llo_original>
// kernel: tpu_custom_call.1
$region0: #{tpu_custom_call.1}
  #allocation0 [shape = 'u32[]', space=smem, size = 0x4, offset = 0x4, fixed_abs, tag = 'smem constant byte address 0x4 - core index']
  #allocation1 [shape = 'u32[144,128]{1,0:T(1,128)}', space=vmem, size = 0x12000, scoped, tag = 'internal scratch']
  %s0 = inlined_call_operand.hbm [shape: bf16[2,8,128], index: 0, kind: input, shape index: {}]
  %s1 = inlined_call_operand.hbm [shape: bf16[128,640], index: 1, kind: input, shape index: {}]
  %s2 = inlined_call_operand.hbm [shape: f32[8,128], index: 2, kind: input, shape index: {}]
  %s3 = inlined_call_operand.vmem [shape: f32[8,128], index: 3, kind: input, shape index: {}]
  %s4 = inlined_call_operand.hbm [shape: f32[2,8,128], index: 4, kind: output, shape index: {}]
  %s5 = sld [smem:[#allocation0]]
  $region61: #{tpu_custom_call.1} parent=0
    _
  %s7 = ssub.s32 1, %s5
  %s8 = scalar_select 0, %s7, %s5
  $region1: #{tpu_custom_call.1} parent=0
    #allocation2 [shape = 'u8[4096]{0}', space=vmem, size = 0x1000, scoped, tag = 'input window, operand 0']
    #allocation3 [shape = 's32[2]{0}', space=sflag, size = 0x8, scoped, tag = 'scoped memory for tpu_custom_call.1']
    #allocation4 [shape = 's32[2]{0}', space=sflag, size = 0x8, scoped, tag = 'scoped memory for tpu_custom_call.1']
    #allocation5 [shape = 'u8[163840]{0}', space=vmem, size = 0x28000, scoped, tag = 'input window, operand 1, single buffered']
    #allocation6 [shape = 's32[1]{0}', space=sflag, size = 0x4, scoped, tag = 'scoped memory for tpu_custom_call.1']
    #allocation7 [shape = 'u8[4096]{0}', space=vmem, size = 0x1000, scoped, tag = 'input window, operand 2, single buffered']
    #allocation8 [shape = 'u8[8192]{0}', space=vmem, size = 0x2000, scoped, tag = 'output window, operand 0']
    %9 = vsyncpa [#allocation3], 0
    %s10 = scalar_lea.sflag [#allocation3], 1
    %11 = vsyncpa %s10, 0
    %12 = vsyncpa [#allocation6], 0
    %13 = vsyncpa [#allocation4], 0
    %s14 = scalar_lea.sflag [#allocation4], 1
    %15 = vsyncpa %s14, 0
    loop: start=0, step=1, limit=4
    $region2: #{tpu_custom_call.1} parent=1 // loop_pre_header
      _
    $region3: #{tpu_custom_call.1} parent=1 // loop_header
      %s17 = sphi 0, %s21
      %p18 = scmp.ge.s32.totalorder %s17, 4
      %s27 = sphi 0, %s29
      %s30 = sphi 0, %s27
      %s31 = sphi 0, %s30
      %s47 = sphi 0, %s31
      %s51 = sphi 0, %s51
      %s53 = sphi 0, %s51
      %s54 = sphi 0, %s53
      %s68 = sphi 0, %s54
      %s72 = sphi 0, %s72
      %s74 = sphi 0, %s72
      %s75 = sphi 0, %s74
      %s89 = sphi 0, %s75
      %s93 = sphi 0, %s93
      %s95 = sphi 0, %s93
      %s96 = sphi 0, %s95
      %s110 = sphi 0, %s96
      %s116 = sphi 0, %s118
      %s119 = sphi 0, %s116
      %s120 = sphi 0, %s119
      %s136 = sphi 0, %s120
    $region4: #{tpu_custom_call.1} parent=1 // loop_header_branch
      %20 = sbr.rel (%p18) target = $region8
    $region5: #{tpu_custom_call.1} parent=1 // loop_body
      %s22 = ssub.s32 %s17, 1
      %s23 = ssub.s32 %s17, 2
      %s24 = sadd.s32 %s17, 1
      %s25 = ssub.s32 %s17, %s24
      %p26 = scmp.eq.s32.totalorder %s25, 0
      %s28 = sadd.s32 %s27, 1
      %s29 = scalar_select %p26, %s27, %s28
      %p32 = pneg %p26
      %p33 = scmp.eq.s32.totalorder %s17, 1
      %p34 = por %p32, %p33
      %p35 = scmp.ne.s32.totalorder %s27, %s30
      %p36 = scmp.eq.s32.totalorder %s17, 0
      %p37 = por %p35, %p36
      %p38 = scmp.ne.s32.totalorder %s27, %s30
      %p39 = scmp.eq.s32.totalorder %s22, 1
      %p40 = por %p38, %p39
      %p41 = scmp.ne.s32.totalorder %s30, %s31
      %p42 = scmp.eq.s32.totalorder %s22, 0
      %p43 = por %p41, %p42
      %p44 = scmp.ne.s32.totalorder %s30, %s31
      %p45 = scmp.eq.s32.totalorder %s23, 1
      %p46 = por %p44, %p45
      %p48 = scmp.ne.s32.totalorder %s31, %s47
      %p49 = scmp.eq.s32.totalorder %s23, 0
      %p50 = por %p48, %p49
      %s52 = sadd.s32 %s51, 1
      %p55 = scmp.eq.s32.totalorder %s17, 1
      %p56 = scmp.ne.s32.totalorder %s51, %s53
      %p57 = scmp.eq.s32.totalorder %s17, 0
      %p58 = por %p56, %p57
      %p59 = scmp.ne.s32.totalorder %s51, %s53
      %p60 = scmp.eq.s32.totalorder %s22, 1
      %p61 = por %p59, %p60
      %p62 = scmp.ne.s32.totalorder %s53, %s54
      %p63 = scmp.eq.s32.totalorder %s22, 0
      %p64 = por %p62, %p63
      %p65 = scmp.ne.s32.totalorder %s53, %s54
      %p66 = scmp.eq.s32.totalorder %s23, 1
      %p67 = por %p65, %p66
      %p69 = scmp.ne.s32.totalorder %s54, %s68
      %p70 = scmp.eq.s32.totalorder %s23, 0
      %p71 = por %p69, %p70
      %s73 = sadd.s32 %s72, 1
      %p76 = scmp.eq.s32.totalorder %s17, 1
      %p77 = scmp.ne.s32.totalorder %s72, %s74
      %p78 = scmp.eq.s32.totalorder %s17, 0
      %p79 = por %p77, %p78
      %p80 = scmp.ne.s32.totalorder %s72, %s74
      %p81 = scmp.eq.s32.totalorder %s22, 1
      %p82 = por %p80, %p81
      %p83 = scmp.ne.s32.totalorder %s74, %s75
      %p84 = scmp.eq.s32.totalorder %s22, 0
      %p85 = por %p83, %p84
      %p86 = scmp.ne.s32.totalorder %s74, %s75
      %p87 = scmp.eq.s32.totalorder %s23, 1
      %p88 = por %p86, %p87
      %p90 = scmp.ne.s32.totalorder %s75, %s89
      %p91 = scmp.eq.s32.totalorder %s23, 0
      %p92 = por %p90, %p91
      %s94 = sadd.s32 %s93, 1
      %p97 = scmp.eq.s32.totalorder %s17, 1
      %p98 = scmp.ne.s32.totalorder %s93, %s95
      %p99 = scmp.eq.s32.totalorder %s17, 0
      %p100 = por %p98, %p99
      %p101 = scmp.ne.s32.totalorder %s93, %s95
      %p102 = scmp.eq.s32.totalorder %s22, 1
      %p103 = por %p101, %p102
      %p104 = scmp.ne.s32.totalorder %s95, %s96
      %p105 = scmp.eq.s32.totalorder %s22, 0
      %p106 = por %p104, %p105
      %p107 = scmp.ne.s32.totalorder %s95, %s96
      %p108 = scmp.eq.s32.totalorder %s23, 1
      %p109 = por %p107, %p108
      %p111 = scmp.ne.s32.totalorder %s96, %s110
      %p112 = scmp.eq.s32.totalorder %s23, 0
      %p113 = por %p111, %p112
      %s114 = ssub.s32 %s17, %s24
      %p115 = scmp.eq.s32.totalorder %s114, 0
      %s117 = sadd.s32 %s116, 1
      %s118 = scalar_select %p115, %s116, %s117
      %p121 = pneg %p115
      %p122 = scmp.eq.s32.totalorder %s17, 1
      %p123 = por %p121, %p122
      %p124 = scmp.ne.s32.totalorder %s116, %s119
      %p125 = scmp.eq.s32.totalorder %s17, 0
      %p126 = por %p124, %p125
      %p127 = scmp.ne.s32.totalorder %s116, %s119
      %p128 = scmp.eq.s32.totalorder %s22, 1
      %p129 = por %p127, %p128
      %p130 = scmp.ne.s32.totalorder %s119, %s120
      %p131 = scmp.eq.s32.totalorder %s22, 0
      %p132 = por %p130, %p131
      %p133 = scmp.ne.s32.totalorder %s119, %s120
      %p134 = scmp.eq.s32.totalorder %s23, 1
      %p135 = por %p133, %p134
      %p137 = scmp.ne.s32.totalorder %s120, %s136
      %p138 = scmp.eq.s32.totalorder %s23, 0
      %p139 = por %p137, %p138
      %p140 = scmp.le.s32.totalorder 1, %s17
      %p141 = scmp.lt.s32.totalorder %s17, 3
      %p142 = pnand %p140, %p141
      %p143 = pneg %p142
      // Predicated region
      $region9: #{tpu_custom_call.1} parent=5 // pred_check
        _
      $region10: #{tpu_custom_call.1} parent=5 // pred_check_branch
        %145 = sbr.rel (%p142) target = $region12
      $region11: #{tpu_custom_call.1} parent=5 // pred_region
        %s146 = ssub.s32 %s17, 1
        // Predicated region
        $region13: #{tpu_custom_call.1} parent=11 // pred_check
          %p147 = pneg %p64
        $region14: #{tpu_custom_call.1} parent=11 // pred_check_branch
          %149 = sbr.rel (%p147) target = $region16
        $region15: #{tpu_custom_call.1} parent=11 // pred_region
          %s151 = ssub.s32 5120, 5120
          %152 = vsyncadd [#allocation6], %s151
          %s153 = sshll.u32 [#allocation5], 4
          %s154 = int_to_ptr.vmem [resolvable:$true] %s153
          %159 = dma.hbm_to_vmem [thread:$0]  %s1, 5120, %s154, [#allocation6], 320, 320, 20
        $region16: #{tpu_custom_call.1} parent=11 // pred_fallthru
          _
        // Predicated region
        $region17: #{tpu_custom_call.1} parent=11 // pred_check
          %p160 = pneg %p85
        $region18: #{tpu_custom_call.1} parent=11 // pred_check_branch
          %162 = sbr.rel (%p160) target = $region20
        $region19: #{tpu_custom_call.1} parent=11 // pred_region
          %s164 = ssub.s32 128, 128
          %165 = vsyncadd [#allocation6], %s164
          %s167 = sshll.u32 [#allocation7], 4
          %s168 = int_to_ptr.vmem [resolvable:$true] %s167
          %170 = dma.hbm_to_vmem [thread:$0]  %s2, 128, %s168, [#allocation6]
        $region20: #{tpu_custom_call.1} parent=11 // pred_fallthru
          _
        // Predicated region
        $region21: #{tpu_custom_call.1} parent=11 // pred_check
          %p171 = pneg %p106
        $region22: #{tpu_custom_call.1} parent=11 // pred_check_branch
          %173 = sbr.rel (%p171) target = $region24
        $region23: #{tpu_custom_call.1} parent=11 // pred_region
          _
        $region24: #{tpu_custom_call.1} parent=11 // pred_fallthru
          _
      $region12: #{tpu_custom_call.1} parent=5 // pred_fallthru
        _
      %p174 = scmp.lt.s32.totalorder %s17, 2
      // Predicated region
      $region25: #{tpu_custom_call.1} parent=5 // pred_check
        %p175 = pneg %p174
      $region26: #{tpu_custom_call.1} parent=5 // pred_check_branch
        %177 = sbr.rel (%p175) target = $region28
      $region27: #{tpu_custom_call.1} parent=5 // pred_region
        // Predicated region
        $region29: #{tpu_custom_call.1} parent=27 // pred_check
          %p178 = pneg %p37
        $region30: #{tpu_custom_call.1} parent=27 // pred_check_branch
          %180 = sbr.rel (%p178) target = $region32
        $region31: #{tpu_custom_call.1} parent=27 // pred_region
          %s181 = sand.u32 %s27, 1
          %s182 = scalar_lea.sflag [#allocation3], %s181
          %s183 = sand.u32 %s27, 1
          %s184 = smul.addr %s183, 4
          %s185 = scalar_lea.vmem [#allocation2], %s184
          %s187 = ssub.s32 64, 64
          %188 = vsyncadd %s182, %s187
          %s189 = smul.addr %s17, 64
          %s190 = scalar_lea.hbm %s0, %s189
          %s192 = sshll.u32 %s185, 4
          %s193 = int_to_ptr.vmem [resolvable:$true] %s192
          %195 = dma.hbm_to_vmem [thread:$0]  %s190, 64, %s193, %s182
        $region32: #{tpu_custom_call.1} parent=27 // pred_fallthru
          _
      $region28: #{tpu_custom_call.1} parent=5 // pred_fallthru
        _
      %p196 = scmp.le.s32.totalorder 1, %s17
      %p197 = scmp.lt.s32.totalorder %s17, 3
      %p198 = pnand %p196, %p197
      %p199 = pneg %p198
      // Predicated region
      $region33: #{tpu_custom_call.1} parent=5 // pred_check
        _
      $region34: #{tpu_custom_call.1} parent=5 // pred_check_branch
        %201 = sbr.rel (%p198) target = $region36
      $region35: #{tpu_custom_call.1} parent=5 // pred_region
        %s202 = ssub.s32 %s17, 1
        %s203 = sand.u32 %s30, 1
        %s204 = scalar_lea.sflag [#allocation3], %s203
        %s205 = sand.u32 %s30, 1
        %s206 = smul.addr %s205, 4
        %s207 = scalar_lea.vmem [#allocation2], %s206
        // Predicated region
        $region37: #{tpu_custom_call.1} parent=35 // pred_check
          %p208 = pneg %p43
        $region38: #{tpu_custom_call.1} parent=35 // pred_check_branch
          %210 = sbr.rel (%p208) target = $region40
        $region39: #{tpu_custom_call.1} parent=35 // pred_region
          %211 = dma.done %s204, 64
        $region40: #{tpu_custom_call.1} parent=35 // pred_fallthru
          _
        // Predicated region
        $region41: #{tpu_custom_call.1} parent=35 // pred_check
          %p212 = pneg %p64
        $region42: #{tpu_custom_call.1} parent=35 // pred_check_branch
          %214 = sbr.rel (%p212) target = $region44
        $region43: #{tpu_custom_call.1} parent=35 // pred_region
          %215 = dma.done [#allocation6], 5120
        $region44: #{tpu_custom_call.1} parent=35 // pred_fallthru
          _
        // Predicated region
        $region45: #{tpu_custom_call.1} parent=35 // pred_check
          %p216 = pneg %p85
        $region46: #{tpu_custom_call.1} parent=35 // pred_check_branch
          %218 = sbr.rel (%p216) target = $region48
        $region47: #{tpu_custom_call.1} parent=35 // pred_region
          %219 = dma.done [#allocation6], 128
        $region48: #{tpu_custom_call.1} parent=35 // pred_fallthru
          _
        %s220 = sand.u32 %s30, 1
        %s221 = scalar_lea.sflag [#allocation3], %s220
        %s222 = sand.u32 %s30, 1
        %s223 = smul.addr %s222, 4
        %s224 = scalar_lea.vmem [#allocation2], %s223
        %p225 = pneg %p43
        %p226 = pneg %p40
        %p227 = pneg %p64
        %p228 = pneg %p61
        %p229 = pneg %p85
        %p230 = pneg %p82
        %p231 = pneg %p106
        %p232 = pneg %p103
        %p233 = pneg %p132
        %p234 = pneg %p129
        %s235 = sand.u32 %s119, 1
        %s236 = scalar_lea.sflag [#allocation4], %s235
        %s237 = sand.u32 %s119, 1
        %s238 = smul.addr %s237, 8
        %s239 = scalar_lea.vmem [#allocation8], %s238
        %v241 = vld [vmem:[%s207] sm:$0xf]
        %v242 = vld [vmem:[#allocation5] sm:$0xff]
        %v243 = vld [vmem:[#allocation5 + $0x8] sm:$0xff]
        %v244 = vld [vmem:[#allocation5 + $0x10] sm:$0xf]
        %v245 = vld [vmem:[#allocation5 + $0x14] sm:$0xff]
        %v246 = vld [vmem:[#allocation5 + $0x1c] sm:$0xff]
        %v247 = vld [vmem:[#allocation5 + $0x24] sm:$0xf]
        %v248 = vld [vmem:[#allocation5 + $0x28] sm:$0xff]
        %v249 = vld [vmem:[#allocation5 + $0x30] sm:$0xff]
        %v250 = vld [vmem:[#allocation5 + $0x38] sm:$0xf]
        %v251 = vld [vmem:[#allocation5 + $0x3c] sm:$0xff]
        %v252 = vld [vmem:[#allocation5 + $0x44] sm:$0xff]
        %v253 = vld [vmem:[#allocation5 + $0x4c] sm:$0xf]
        %v254 = vld [vmem:[#allocation5 + $0x50] sm:$0xff]
        %v255 = vld [vmem:[#allocation5 + $0x58] sm:$0xff]
        %v256 = vld [vmem:[#allocation5 + $0x60] sm:$0xf]
        %v257 = vld [vmem:[#allocation5 + $0x64] sm:$0xff]
        %v258 = vld [vmem:[#allocation5 + $0x6c] sm:$0xff]
        %v259 = vld [vmem:[#allocation5 + $0x74] sm:$0xf]
        %v260 = vld [vmem:[#allocation5 + $0x78] sm:$0xff]
        %v261 = vld [vmem:[#allocation5 + $0x80] sm:$0xff]
        %v262 = vld [vmem:[#allocation5 + $0x88] sm:$0xf]
        %v263 = vld [vmem:[#allocation5 + $0x8c] sm:$0xff]
        %v264 = vld [vmem:[#allocation5 + $0x94] sm:$0xff]
        %v265 = vld [vmem:[#allocation5 + $0x9c] sm:$0xf]
        %v266 = vld [vmem:[#allocation5 + $0xa0] sm:$0xff]
        %v267 = vld [vmem:[#allocation5 + $0xa8] sm:$0xff]
        %v268 = vld [vmem:[#allocation5 + $0xb0] sm:$0xf]
        %v269 = vld [vmem:[#allocation5 + $0xb4] sm:$0xff]
        %v270 = vld [vmem:[#allocation5 + $0xbc] sm:$0xff]
        %v271 = vld [vmem:[#allocation5 + $0xc4] sm:$0xf]
        %v272 = vld [vmem:[#allocation5 + $0xc8] sm:$0xff]
        %v273 = vld [vmem:[#allocation5 + $0xd0] sm:$0xff]
        %v274 = vld [vmem:[#allocation5 + $0xd8] sm:$0xf]
        %v275 = vld [vmem:[#allocation5 + $0xdc] sm:$0xff]
        %v276 = vld [vmem:[#allocation5 + $0xe4] sm:$0xff]
        %v277 = vld [vmem:[#allocation5 + $0xec] sm:$0xf]
        %v278 = vld [vmem:[#allocation5 + $0xf0] sm:$0xff]
        %v279 = vld [vmem:[#allocation5 + $0xf8] sm:$0xff]
        %v280 = vld [vmem:[#allocation5 + $0x100] sm:$0xf]
        %v281 = vld [vmem:[#allocation5 + $0x104] sm:$0xff]
        %v282 = vld [vmem:[#allocation5 + $0x10c] sm:$0xff]
        %v283 = vld [vmem:[#allocation5 + $0x114] sm:$0xf]
        %v284 = vld [vmem:[#allocation5 + $0x118] sm:$0xff]
        %v285 = vld [vmem:[#allocation5 + $0x120] sm:$0xff]
        %v286 = vld [vmem:[#allocation5 + $0x128] sm:$0xf]
        %v287 = vld [vmem:[#allocation5 + $0x12c] sm:$0xff]
        %v288 = vld [vmem:[#allocation5 + $0x134] sm:$0xff]
        %v289 = vld [vmem:[#allocation5 + $0x13c] sm:$0xf]
        %v338 = vunpack.c.l.b16 %v242
        %v339 = vunpack.c.h.b16 %v242
        %v340 = vunpack.c.l.b16 %v243
        %v341 = vunpack.c.h.b16 %v243
        %v342 = vunpack.c.l.b16 %v244
        %v343 = vunpack.c.l.b16 %v245
        %v344 = vunpack.c.h.b16 %v245
        %v345 = vunpack.c.l.b16 %v246
        %v346 = vunpack.c.h.b16 %v246
        %v347 = vunpack.c.l.b16 %v247
        %v348 = vunpack.c.l.b16 %v248
        %v349 = vunpack.c.h.b16 %v248
        %v350 = vunpack.c.l.b16 %v249
        %v351 = vunpack.c.h.b16 %v249
        %v352 = vunpack.c.l.b16 %v250
        %v353 = vunpack.c.l.b16 %v251
        %v354 = vunpack.c.h.b16 %v251
        %v355 = vunpack.c.l.b16 %v252
        %v356 = vunpack.c.h.b16 %v252
        %v357 = vunpack.c.l.b16 %v253
        %v358 = vunpack.c.l.b16 %v254
        %v359 = vunpack.c.h.b16 %v254
        %v360 = vunpack.c.l.b16 %v255
        %v361 = vunpack.c.h.b16 %v255
        %v362 = vunpack.c.l.b16 %v256
        %v363 = vunpack.c.l.b16 %v257
        %v364 = vunpack.c.h.b16 %v257
        %v365 = vunpack.c.l.b16 %v258
        %v366 = vunpack.c.h.b16 %v258
        %v367 = vunpack.c.l.b16 %v259
        %v368 = vunpack.c.l.b16 %v260
        %v369 = vunpack.c.h.b16 %v260
        %v370 = vunpack.c.l.b16 %v261
        %v371 = vunpack.c.h.b16 %v261
        %v372 = vunpack.c.l.b16 %v262
        %v373 = vunpack.c.l.b16 %v263
        %v374 = vunpack.c.h.b16 %v263
        %v375 = vunpack.c.l.b16 %v264
        %v376 = vunpack.c.h.b16 %v264
        %v377 = vunpack.c.l.b16 %v265
        %v378 = vunpack.c.l.b16 %v266
        %v379 = vunpack.c.h.b16 %v266
        %v380 = vunpack.c.l.b16 %v267
        %v381 = vunpack.c.h.b16 %v267
        %v382 = vunpack.c.l.b16 %v268
        %v383 = vunpack.c.l.b16 %v269
        %v384 = vunpack.c.h.b16 %v269
        %v385 = vunpack.c.l.b16 %v270
        %v386 = vunpack.c.h.b16 %v270
        %v387 = vunpack.c.l.b16 %v271
        %v388 = vunpack.c.l.b16 %v272
        %v389 = vunpack.c.h.b16 %v272
        %v390 = vunpack.c.l.b16 %v273
        %v391 = vunpack.c.h.b16 %v273
        %v392 = vunpack.c.l.b16 %v274
        %v393 = vunpack.c.l.b16 %v275
        %v394 = vunpack.c.h.b16 %v275
        %v395 = vunpack.c.l.b16 %v276
        %v396 = vunpack.c.h.b16 %v276
        %v397 = vunpack.c.l.b16 %v277
        %v398 = vunpack.c.l.b16 %v278
        %v399 = vunpack.c.h.b16 %v278
        %v400 = vunpack.c.l.b16 %v279
        %v401 = vunpack.c.h.b16 %v279
        %v402 = vunpack.c.l.b16 %v280
        %v403 = vunpack.c.l.b16 %v281
        %v404 = vunpack.c.h.b16 %v281
        %v405 = vunpack.c.l.b16 %v282
        %v406 = vunpack.c.h.b16 %v282
        %v407 = vunpack.c.l.b16 %v283
        %v408 = vunpack.c.l.b16 %v284
        %v409 = vunpack.c.h.b16 %v284
        %v410 = vunpack.c.l.b16 %v285
        %v411 = vunpack.c.h.b16 %v285
        %v412 = vunpack.c.l.b16 %v286
        %v413 = vunpack.c.l.b16 %v287
        %v414 = vunpack.c.h.b16 %v287
        %v415 = vunpack.c.l.b16 %v288
        %v416 = vunpack.c.h.b16 %v288
        %v417 = vunpack.c.l.b16 %v289
        %v418 = vpack.c.b16 %v343, %v338
        %v419 = vpack.c.b16 %v344, %v339
        %v420 = vpack.c.b16 %v345, %v340
        %v421 = vpack.c.b16 %v346, %v341
        %v422 = vpack.c.b16 %v347, %v342
        %v423 = vpack.c.b16 %v353, %v348
        %v424 = vpack.c.b16 %v354, %v349
        %v425 = vpack.c.b16 %v355, %v350
        %v426 = vpack.c.b16 %v356, %v351
        %v427 = vpack.c.b16 %v357, %v352
        %v428 = vpack.c.b16 %v363, %v358
        %v429 = vpack.c.b16 %v364, %v359
        %v430 = vpack.c.b16 %v365, %v360
        %v431 = vpack.c.b16 %v366, %v361
        %v432 = vpack.c.b16 %v367, %v362
        %v433 = vpack.c.b16 %v373, %v368
        %v434 = vpack.c.b16 %v374, %v369
        %v435 = vpack.c.b16 %v375, %v370
        %v436 = vpack.c.b16 %v376, %v371
        %v437 = vpack.c.b16 %v377, %v372
        %v438 = vpack.c.b16 %v383, %v378
        %v439 = vpack.c.b16 %v384, %v379
        %v440 = vpack.c.b16 %v385, %v380
        %v441 = vpack.c.b16 %v386, %v381
        %v442 = vpack.c.b16 %v387, %v382
        %v443 = vpack.c.b16 %v393, %v388
        %v444 = vpack.c.b16 %v394, %v389
        %v445 = vpack.c.b16 %v395, %v390
        %v446 = vpack.c.b16 %v396, %v391
        %v447 = vpack.c.b16 %v397, %v392
        %v448 = vpack.c.b16 %v403, %v398
        %v449 = vpack.c.b16 %v404, %v399
        %v450 = vpack.c.b16 %v405, %v400
        %v451 = vpack.c.b16 %v406, %v401
        %v452 = vpack.c.b16 %v407, %v402
        %v453 = vpack.c.b16 %v413, %v408
        %v454 = vpack.c.b16 %v414, %v409
        %v455 = vpack.c.b16 %v415, %v410
        %v456 = vpack.c.b16 %v416, %v411
        %v457 = vpack.c.b16 %v417, %v412
        %498 = vmatprep.subr.bf16.mxu0 %v419
        %499 = vmatpush1.bf16.msra.mxu0 %v418
        %500 = vmatprep.subr.bf16.mxu0 %v424
        %501 = vmatpush1.bf16.msra.mxu0 %v423
        %502 = vmatprep.subr.bf16.mxu0 %v429
        %503 = vmatpush1.bf16.msra.mxu0 %v428
        %504 = vmatprep.subr.bf16.mxu0 %v434
        %505 = vmatpush1.bf16.msra.mxu0 %v433
        %506 = vmatprep.subr.bf16.mxu0 %v439
        %507 = vmatpush1.bf16.msra.mxu0 %v438
        %508 = vmatprep.subr.bf16.mxu0 %v444
        %509 = vmatpush1.bf16.msra.mxu0 %v443
        %510 = vmatprep.subr.bf16.mxu0 %v449
        %511 = vmatpush1.bf16.msra.mxu0 %v448
        %512 = vmatprep.subr.bf16.mxu0 %v454
        %513 = vmatpush1.bf16.msra.mxu0 %v453
        %514 = vmatprep.subr.bf16.mxu0 0
        %515 = vmatpush1.bf16.msra.mxu0 0
        %516 = vmatprep.subr.bf16.mxu0 0
        %517 = vmatpush1.bf16.msra.mxu0 0
        %518 = vmatprep.subr.bf16.mxu0 0
        %519 = vmatpush1.bf16.msra.mxu0 0
        %520 = vmatprep.subr.bf16.mxu0 0
        %521 = vmatpush1.bf16.msra.mxu0 0
        %522 = vmatprep.subr.bf16.mxu0 0
        %523 = vmatpush1.bf16.msra.mxu0 0
        %524 = vmatprep.subr.bf16.mxu0 0
        %525 = vmatpush1.bf16.msra.mxu0 0
        %526 = vmatprep.subr.bf16.mxu0 0
        %527 = vmatpush1.bf16.msra.mxu0 0
        %528 = vmatprep.subr.bf16.mxu0 0
        %529 = vmatpush1.bf16.msra.mxu0 0
        %530 = vmatprep.mubr.bf16.mxu0 0
        %531 = vmatmul.mubr.bf16.gmra.mrb[0].mxu0 %v241
        %v532 = vpop.f32.mrb[0].mxu0
        %v533 = vadd.f32 0.0, %v532
        %v534 = vpop.f32.mrb[0].mxu0
        %v535 = vadd.f32 0.0, %v534
        %v536 = vpop.f32.mrb[0].mxu0
        %v537 = vpop.f32.mrb[0].mxu0
        %538 = vdwg.mxu0
        %539 = vmatprep.subr.bf16.mxu0 %v421
        %540 = vmatpush1.bf16.msra.mxu0 %v420
        %541 = vmatprep.subr.bf16.mxu0 %v426
        %542 = vmatpush1.bf16.msra.mxu0 %v425
        %543 = vmatprep.subr.bf16.mxu0 %v431
        %544 = vmatpush1.bf16.msra.mxu0 %v430
        %545 = vmatprep.subr.bf16.mxu0 %v436
        %546 = vmatpush1.bf16.msra.mxu0 %v435
        %547 = vmatprep.subr.bf16.mxu0 %v441
        %548 = vmatpush1.bf16.msra.mxu0 %v440
        %549 = vmatprep.subr.bf16.mxu0 %v446
        %550 = vmatpush1.bf16.msra.mxu0 %v445
        %551 = vmatprep.subr.bf16.mxu0 %v451
        %552 = vmatpush1.bf16.msra.mxu0 %v450
        %553 = vmatprep.subr.bf16.mxu0 %v456
        %554 = vmatpush1.bf16.msra.mxu0 %v455
        %555 = vmatprep.subr.bf16.mxu0 0
        %556 = vmatpush1.bf16.msra.mxu0 0
        %557 = vmatprep.subr.bf16.mxu0 0
        %558 = vmatpush1.bf16.msra.mxu0 0
        %559 = vmatprep.subr.bf16.mxu0 0
        %560 = vmatpush1.bf16.msra.mxu0 0
        %561 = vmatprep.subr.bf16.mxu0 0
        %562 = vmatpush1.bf16.msra.mxu0 0
        %563 = vmatprep.subr.bf16.mxu0 0
        %564 = vmatpush1.bf16.msra.mxu0 0
        %565 = vmatprep.subr.bf16.mxu0 0
        %566 = vmatpush1.bf16.msra.mxu0 0
        %567 = vmatprep.subr.bf16.mxu0 0
        %568 = vmatpush1.bf16.msra.mxu0 0
        %569 = vmatprep.subr.bf16.mxu0 0
        %570 = vmatpush1.bf16.msra.mxu0 0
        %571 = vmatprep.mubr.bf16.mxu0 0
        %572 = vmatmul.mubr.bf16.gmra.mrb[0].mxu0 %v241
        %v573 = vpop.f32.mrb[0].mxu0
        %v574 = vadd.f32 0.0, %v573
        %v575 = vpop.f32.mrb[0].mxu0
        %v576 = vadd.f32 0.0, %v575
        %v577 = vpop.f32.mrb[0].mxu0
        %v578 = vpop.f32.mrb[0].mxu0
        %579 = vdwg.mxu0
        %580 = vmatprep.subr.bf16.mxu0 0
        %581 = vmatpush1.bf16.msra.mxu0 %v422
        %582 = vmatprep.subr.bf16.mxu0 0
        %583 = vmatpush1.bf16.msra.mxu0 %v427
        %584 = vmatprep.subr.bf16.mxu0 0
        %585 = vmatpush1.bf16.msra.mxu0 %v432
        %586 = vmatprep.subr.bf16.mxu0 0
        %587 = vmatpush1.bf16.msra.mxu0 %v437
        %588 = vmatprep.subr.bf16.mxu0 0
        %589 = vmatpush1.bf16.msra.mxu0 %v442
        %590 = vmatprep.subr.bf16.mxu0 0
        %591 = vmatpush1.bf16.msra.mxu0 %v447
        %592 = vmatprep.subr.bf16.mxu0 0
        %593 = vmatpush1.bf16.msra.mxu0 %v452
        %594 = vmatprep.subr.bf16.mxu0 0
        %595 = vmatpush1.bf16.msra.mxu0 %v457
        %596 = vmatprep.subr.bf16.mxu0 0
        %597 = vmatpush1.bf16.msra.mxu0 0
        %598 = vmatprep.subr.bf16.mxu0 0
        %599 = vmatpush1.bf16.msra.mxu0 0
        %600 = vmatprep.subr.bf16.mxu0 0
        %601 = vmatpush1.bf16.msra.mxu0 0
        %602 = vmatprep.subr.bf16.mxu0 0
        %603 = vmatpush1.bf16.msra.mxu0 0
        %604 = vmatprep.subr.bf16.mxu0 0
        %605 = vmatpush1.bf16.msra.mxu0 0
        %606 = vmatprep.subr.bf16.mxu0 0
        %607 = vmatpush1.bf16.msra.mxu0 0
        %608 = vmatprep.subr.bf16.mxu0 0
        %609 = vmatpush1.bf16.msra.mxu0 0
        %610 = vmatprep.subr.bf16.mxu0 0
        %611 = vmatpush1.bf16.msra.mxu0 0
        %612 = vmatprep.mubr.bf16.mxu0 0
        %613 = vmatmul.mubr.bf16.gmra.mrb[0].mxu0 %v241
        %v614 = vpop.f32.mrb[0].mxu0
        %v615 = vadd.f32 0.0, %v614
        %v616 = vpop.f32.mrb[0].mxu0
        %v617 = vpop.f32.mrb[0].mxu0
        %v618 = vpop.f32.mrb[0].mxu0
        %619 = vdwg.mxu0
        %v620 = vld [vmem:[#allocation7] sm:$0xff]
        %v621 = vld [vmem:[%s3] sm:$0xff]
        %v622 = vmul.f32 %v533, %v620
        %v623 = vmul.f32 %v576, %v621
        %v624 = vadd.f32 %v622, %v623
        %v625 = vmul.f32 %v535, %v620
        %v626 = vmul.f32 %v615, %v621
        %v627 = vadd.f32 %v625, %v626
        %v628 = vpack.c.bf16 %v624, %v624
        %v629 = vpack.c.bf16 %v627, %v627
        %630 = vmatprep.subr.bf16.mxu0 0
        %631 = vmatpush1.bf16.xpose.msra.mxu0 %v629
        %632 = vmatprep.subr.bf16.mxu0 0
        %633 = vmatpush1.bf16.xpose.msra.mxu0 0
        %634 = vmatprep.subr.bf16.mxu0 0
        %635 = vmatpush1.bf16.xpose.msra.mxu0 0
        %636 = vmatprep.subr.bf16.mxu0 0
        %637 = vmatpush1.bf16.xpose.msra.mxu0 0
        %638 = vmatprep.subr.bf16.mxu0 0
        %639 = vmatpush1.bf16.xpose.msra.mxu0 0
        %640 = vmatprep.subr.bf16.mxu0 0
        %641 = vmatpush1.bf16.xpose.msra.mxu0 0
        %642 = vmatprep.subr.bf16.mxu0 0
        %643 = vmatpush1.bf16.xpose.msra.mxu0 0
        %644 = vmatprep.subr.bf16.mxu0 0
        %645 = vmatpush1.bf16.xpose.msra.mxu0 0
        %646 = vmatprep.subr.bf16.mxu0 0
        %647 = vmatpush1.bf16.xpose.msra.mxu0 0
        %648 = vmatprep.subr.bf16.mxu0 0
        %649 = vmatpush1.bf16.xpose.msra.mxu0 0
        %650 = vmatprep.subr.bf16.mxu0 0
        %651 = vmatpush1.bf16.xpose.msra.mxu0 0
        %652 = vmatprep.subr.bf16.mxu0 0
        %653 = vmatpush1.bf16.xpose.msra.mxu0 0
        %654 = vmatprep.subr.bf16.mxu0 0
        %655 = vmatpush1.bf16.xpose.msra.mxu0 0
        %656 = vmatprep.subr.bf16.mxu0 0
        %657 = vmatpush1.bf16.xpose.msra.mxu0 0
        %658 = vmatprep.subr.bf16.mxu0 0
        %659 = vmatpush1.bf16.xpose.msra.mxu0 0
        %660 = vmatprep.subr.bf16.mxu0 0
        %661 = vmatpush1.bf16.xpose.msra.mxu0 0
        %662 = vmatprep.mubr.bf16.mxu0 0
        %663 = vmatmul.mubr.bf16.gmra.mrb[0].mxu0 %v628
        %v664 = vpop.f32.mrb[0].mxu0
        %v665 = vadd.f32 0.0, %v664
        %v666 = vpop.f32.mrb[0].mxu0
        %v667 = vpop.f32.mrb[0].mxu0
        %v668 = vpop.f32.mrb[0].mxu0
        %669 = vdwg.mxu0
        %v670 = vlaneseq
        %v671 = vshrl.u32 %v670, 7
        %v672 = vlaneseq
        %v673 = vand.u32 %v672, 127
        %vm674 = vcmp.ge.s32.totalorder %v671, %v673
        %v675 = vsel %vm674, %v665, -inf
        %vm676 = vcmask 64512
        %v677 = vsel %vm676, %v675, -inf
        %678 = vmax.xlane.f32.xlu0 %v677
        %v679 = vpop.xlane.xlu0 %678
        %v680 = vsub.f32 %v675, %v679
        %v681 = vmul.f32 %v680, 1.442695
        %v682 = vpow.pop %v681
        %v683 = vpack.c.bf16 %v682, %v682
        %v684 = vpack.c.bf16 %v574, %v574
        %v686 = vsel %vm676, %v683, 0
        %vm688 = vcmask 1043456
        %v690 = vsel %vm688, %v684, 0
        %692 = vmatprep.subr.bf16.mxu0 0
        %693 = vmatpush1.bf16.msra.mxu0 %v690
        %694 = vmatprep.subr.bf16.mxu0 0
        %695 = vmatpush1.bf16.msra.mxu0 0
        %696 = vmatprep.subr.bf16.mxu0 0
        %697 = vmatpush1.bf16.msra.mxu0 0
        %698 = vmatprep.subr.bf16.mxu0 0
        %699 = vmatpush1.bf16.msra.mxu0 0
        %700 = vmatprep.subr.bf16.mxu0 0
        %701 = vmatpush1.bf16.msra.mxu0 0
        %702 = vmatprep.subr.bf16.mxu0 0
        %703 = vmatpush1.bf16.msra.mxu0 0
        %704 = vmatprep.subr.bf16.mxu0 0
        %705 = vmatpush1.bf16.msra.mxu0 0
        %706 = vmatprep.subr.bf16.mxu0 0
        %707 = vmatpush1.bf16.msra.mxu0 0
        %708 = vmatprep.subr.bf16.mxu0 0
        %709 = vmatpush1.bf16.msra.mxu0 0
        %710 = vmatprep.subr.bf16.mxu0 0
        %711 = vmatpush1.bf16.msra.mxu0 0
        %712 = vmatprep.subr.bf16.mxu0 0
        %713 = vmatpush1.bf16.msra.mxu0 0
        %714 = vmatprep.subr.bf16.mxu0 0
        %715 = vmatpush1.bf16.msra.mxu0 0
        %716 = vmatprep.subr.bf16.mxu0 0
        %717 = vmatpush1.bf16.msra.mxu0 0
        %718 = vmatprep.subr.bf16.mxu0 0
        %719 = vmatpush1.bf16.msra.mxu0 0
        %720 = vmatprep.subr.bf16.mxu0 0
        %721 = vmatpush1.bf16.msra.mxu0 0
        %722 = vmatprep.subr.bf16.mxu0 0
        %723 = vmatpush1.bf16.msra.mxu0 0
        %724 = vmatprep.mubr.bf16.mxu0 0
        %725 = vmatmul.mubr.bf16.gmra.mrb[0].mxu0 %v686
        %v726 = vpop.f32.mrb[0].mxu0
        %v727 = vadd.f32 0.0, %v726
        %v728 = vpop.f32.mrb[0].mxu0
        %v729 = vpop.f32.mrb[0].mxu0
        %v730 = vpop.f32.mrb[0].mxu0
        %731 = vdwg.mxu0
        %v732 = vsel %vm676, %v682, 0.0
        %733 = vadd.xlane.f32.xlu0 %v732
        %v734 = vpop.xlane.xlu0 %733
        %v735 = vrcp.pop %v734
        %v736 = vmul.f32 %v727, %v735
        %737 = vst [vmem:[%s239] sm:$0xff] %v736
        %s738 = sand.u32 %s119, 1
        %s739 = scalar_lea.sflag [#allocation4], %s738
        %s740 = sand.u32 %s119, 1
        %s741 = smul.addr %s740, 8
        %s742 = scalar_lea.vmem [#allocation8], %s741
        // Predicated region
        $region49: #{tpu_custom_call.1} parent=35 // pred_check
          %p743 = pneg %p129
        $region50: #{tpu_custom_call.1} parent=35 // pred_check_branch
          %745 = sbr.rel (%p743) target = $region52
        $region51: #{tpu_custom_call.1} parent=35 // pred_region
          %s747 = ssub.s32 128, 128
          %748 = vsyncadd %s739, %s747
          %s749 = smul.addr %s22, 128
          %s750 = scalar_lea.hbm %s4, %s749
          %s752 = sshll.u32 %s742, 4
          %s753 = int_to_ptr.vmem [resolvable:$true] %s752
          %755 = dma.vmem_to_hbm [thread:$0]  %s753, 128, %s750, %s739
        $region52: #{tpu_custom_call.1} parent=35 // pred_fallthru
          _
      $region36: #{tpu_custom_call.1} parent=5 // pred_fallthru
        _
      %p756 = scmp.le.s32.totalorder 2, %s17
      // Predicated region
      $region53: #{tpu_custom_call.1} parent=5 // pred_check
        %p757 = pneg %p756
      $region54: #{tpu_custom_call.1} parent=5 // pred_check_branch
        %759 = sbr.rel (%p757) target = $region56
      $region55: #{tpu_custom_call.1} parent=5 // pred_region
        %s760 = ssub.s32 %s17, 2
        // Predicated region
        $region57: #{tpu_custom_call.1} parent=55 // pred_check
          %p761 = pneg %p135
        $region58: #{tpu_custom_call.1} parent=55 // pred_check_branch
          %763 = sbr.rel (%p761) target = $region60
        $region59: #{tpu_custom_call.1} parent=55 // pred_region
          %s764 = sand.u32 %s120, 1
          %s765 = scalar_lea.sflag [#allocation4], %s764
          %s766 = sand.u32 %s120, 1
          %s767 = smul.addr %s766, 8
          %s768 = scalar_lea.vmem [#allocation8], %s767
          %769 = dma.done %s765, 128
        $region60: #{tpu_custom_call.1} parent=55 // pred_fallthru
          _
      $region56: #{tpu_custom_call.1} parent=5 // pred_fallthru
        _
    $region6: #{tpu_custom_call.1} parent=1 // loop_footer
      %s21 = sadd.s32 1, %s17
    $region7: #{tpu_custom_call.1} parent=1 // loop_footer_branch
      %16 = sbr.rel target = $region3
    $region8: #{tpu_custom_call.1} parent=1 // loop_exit
      _
    %770 = vsyncpa [#allocation3], 1
    %s771 = scalar_lea.sflag [#allocation3], 1
    %772 = vsyncpa %s771, 1
    %773 = vsyncpa [#allocation6], 1
    %774 = vsyncpa [#allocation4], 1
    %s775 = scalar_lea.sflag [#allocation4], 1
    %776 = vsyncpa %s775, 1

</llo_original>
